<compile_context>
chip_gen: v6e
topology: v6e:2x2x1
jax: 0.10.0
libtpu: 0.0.40
codegen_flags: <defaults>
</compile_context>

<pallas_src>
import jax
import jax.numpy as jnp
from jax.experimental import pallas as pl
from jax.experimental.pallas import tpu as pltpu

_TARGET_BLOCK_BYTES = 16 * 1024 * 1024   # upper bound for one output block
_VMEM_HEADROOM_BYTES = 2 * 1024 * 1024   # slack on top of buffers we account for


def _round_up(x: int, m: int) -> int:
    return ((x + m - 1) // m) * m


def _vmem_capacity_bytes() -> int:
    """Physical VMEM per core, with a conservative fallback."""
    try:
        return int(pltpu.get_tpu_info().vmem_capacity_bytes)
    except Exception:
        return 64 * 1024 * 1024  # v7x per-TensorCore physical VMEM (smallest gen)


def _max_block_bytes() -> int:
    # Keep 2x (double-buffered) output blocks + latent tile + headroom well
    # inside physical VMEM on every generation:
    #   v5e/v6e: 128 MiB physical -> 16 MiB blocks (explicit vmem_limit_bytes
    #            below overrides the 16/32 MiB scoped defaults).
    #   v7x:      64 MiB physical -> ~12.8 MiB blocks, so 2*block + latent
    #            stays under the 32 MiB scoped default with room to spare.
    return max(1 << 20, min(_TARGET_BLOCK_BYTES, _vmem_capacity_bytes() // 5))


def _choose_blocks(batch_size: int, ld: int, itemsize: int,
                   max_block_bytes: int) -> tuple[int, int]:
    """Pick (batch_block, ld_block) obeying the (8, 128) BlockSpec rules."""
    rows_ref = min(8, batch_size)

    # --- lane (L*D) tile: full extent if it fits, else a multiple of 128 ----
    if rows_ref * ld * itemsize <= max_block_bytes:
        ld_tile = ld
    else:
        lanes = (max_block_bytes // (rows_ref * itemsize)) // 128 * 128
        ld_tile = max(128, min(ld, lanes))

    # --- batch tile: multiple of 8 (or the full batch), within the budget ---
    row_block_bytes = ld_tile * itemsize
    tb_cap = max(1, max_block_bytes // row_block_bytes)
    if batch_size <= tb_cap:
        tb = batch_size                    # full extent: always a legal block
    else:
        tb = max(8, (tb_cap // 8) * 8)     # sublane-aligned interior blocks

    # --- v7x: guarantee >= 2 grid blocks so both TensorCores write ----------
    n_ld = pl.cdiv(ld, ld_tile)
    n_b = pl.cdiv(batch_size, tb)
    if n_ld * n_b == 1 and batch_size >= 16:
        tb = _round_up(pl.cdiv(batch_size, 2), 8)

    # --- prefer a tb that divides the batch evenly (no masked tail block) ---
    if 0 < tb < batch_size and batch_size % tb != 0:
        for cand in range(tb, tb // 2 - 1, -8):
            if cand >= 8 and batch_size % cand == 0:
                tb = cand
                break

    return tb, ld_tile


def _embed_kernel(lat_ref, out_ref):
    # lat_ref: (rep, ld_tile) latent tile (rep == 8 sublane group, or 1).
    # out_ref: (tb,  ld_tile) lane-dense output block for tb batch rows.
    if lat_ref.shape[0] == 1:
        # Tiny / non-multiple-of-8 batch blocks: sublane-broadcast one row.
        out_ref[...] = jnp.broadcast_to(lat_ref[...], out_ref.shape)
    else:
        # Full 8-row sublane group already materialized -> straight vreg copies.
        reps = out_ref.shape[0] // lat_ref.shape[0]
        out_ref[...] = jnp.tile(lat_ref[...], (reps, 1))


def perceiver_embeddings(latents: jax.Array, batch_size: int, *,
                         batch_block: int | None = None,
                         ld_block: int | None = None) -> jax.Array:
    """Equivalent of PerceiverEmbeddings.forward(batch_size).

    Overrides (`batch_block`, `ld_block`) are for testing; `batch_block` must
    be a multiple of 8 or equal to batch_size, `ld_block` a multiple of 128 or
    equal to num_latents * d_latents.
    """
    num_latents, d_latents = latents.shape
    ld = num_latents * d_latents
    itemsize = jnp.dtype(latents.dtype).itemsize

    max_block_bytes = _max_block_bytes()
    tb_auto, ld_tile_auto = _choose_blocks(batch_size, ld, itemsize, max_block_bytes)
    tb = min(batch_size, batch_block) if batch_block is not None else tb_auto
    ld_tile = min(ld, ld_block) if ld_block is not None else ld_tile_auto

    n_ld = pl.cdiv(ld, ld_tile)
    n_b = pl.cdiv(batch_size, tb)

    # Pre-replicate the latent row to a full sublane group (tiny: 8 x L*D) so
    # the in-kernel fill needs no cross-sublane broadcast.
    rep = 8 if (tb >= 8 and tb % 8 == 0) else 1
    lat_rep = jnp.broadcast_to(latents.reshape(1, ld), (rep, ld))

    # Explicit scoped-VMEM limit: double-buffered output + latent tile + slack.
    block_bytes = tb * ld_tile * itemsize
    lat_block_bytes = rep * ld_tile * itemsize
    vmem_limit = max(4 << 20,
                     int(2 * block_bytes + 2 * lat_block_bytes + _VMEM_HEADROOM_BYTES))

    out_bytes = batch_size * ld * itemsize
    cost = pl.CostEstimate(flops=0, transcendentals=0,
                           bytes_accessed=out_bytes + rep * ld * itemsize)

    out_flat = pl.pallas_call(
        _embed_kernel,
        out_shape=jax.ShapeDtypeStruct((batch_size, ld), latents.dtype),
        # L*D axis outermost so the (constant-index) latent tile re-DMAs at
        # most n_ld times; both axes are independent -> "parallel".
        grid=(n_ld, n_b),
        in_specs=[pl.BlockSpec((rep, ld_tile), lambda l, b: (0, l))],
        out_specs=pl.BlockSpec((tb, ld_tile), lambda l, b: (b, l)),
        compiler_params=pltpu.CompilerParams(
            dimension_semantics=("parallel", "parallel"),
            vmem_limit_bytes=vmem_limit,
        ),
        cost_estimate=cost,
    )(lat_rep)

    # Free (contiguity-preserving) reshape back to the module's output layout.
    return out_flat.reshape(batch_size, num_latents, d_latents)


if __name__ == "__main__":
    # Synthetic deterministic "cfg": num_latents=8, d_latents=128.
    num_latents = 8
    d_latents = 128

    key = jax.random.PRNGKey(0)
    # nn.Parameter(torch.randn(num_latents, d_latents)) -> standard normal init.
    latents = jax.random.normal(key, (num_latents, d_latents), dtype=jnp.float32)

    def check(batch_size, **overrides):
        out = perceiver_embeddings(latents, batch_size, **overrides)
        out = jax.block_until_ready(out)
        ref = jnp.broadcast_to(latents[None, :, :],
                               (batch_size, num_latents, d_latents))
        assert out.shape == (batch_size, num_latents, d_latents)
        assert out.dtype == latents.dtype
        assert bool(jnp.all(out == ref))

    # Tiny batch from the spec: single block, broadcast path.
    check(2)
    # Auto-split into >= 2 batch blocks (dual-TensorCore path on v7x).
    check(16)
    # Ragged tail block (blocks of 8, 8, 4) exercising boundary masking.
    check(20, batch_block=8)
    # Lane-tiled L*D path (2-D grid, multiple-of-128 lane blocks).
    check(16, batch_block=8, ld_block=256)

    print("KERNEL_OK")
</pallas_src>

<mosaic_0001>
module attributes {stable_mosaic.version = 11 : i64} {
  func.func @_embed_kernel(%arg0: i32, %arg1: i32, %arg2: memref<1x1024xf32, #tpu.memory_space<vmem>>, %arg3: memref<2x1024xf32, #tpu.memory_space<vmem>>) attributes {dimension_semantics = [#tpu.dimension_semantics<parallel>, #tpu.dimension_semantics<parallel>], iteration_bounds = array<i64: 1, 1>, scalar_prefetch = 0 : i64, scratch_operands = 0 : i64, tpu.core_type = #tpu.core_type<tc>, window_params = [{transform_indices = @transform_0, window_bounds = array<i64: 1, 1024>}, {transform_indices = @transform_1, window_bounds = array<i64: 2, 1024>}]} {
    %c0 = arith.constant 0 : index
    %c0_0 = arith.constant 0 : index
    %0 = vector.load %arg2[%c0, %c0_0] : memref<1x1024xf32, #tpu.memory_space<vmem>>, vector<1x1024xf32>
    %1 = vector.shape_cast %0 : vector<1x1024xf32> to vector<1x1024xf32>
    %2 = vector.broadcast %1 : vector<1x1024xf32> to vector<2x1024xf32>
    %c0_1 = arith.constant 0 : index
    %c0_2 = arith.constant 0 : index
    %3 = vector.load %arg3[%c0_1, %c0_2] : memref<2x1024xf32, #tpu.memory_space<vmem>>, vector<2x1024xf32>
    tpu.vector_store %arg3[%c0_1, %c0_2], %2 {strides = array<i32>} : memref<2x1024xf32, #tpu.memory_space<vmem>>, vector<2x1024xf32>,
    return
  }
  func.func @transform_0(%arg0: i32, %arg1: i32) -> (i32, i32) {
    %c0_i32 = arith.constant 0 : i32
    %c0_i32_0 = arith.constant 0 : i32
    return %c0_i32, %arg0 : i32, i32
  }
  func.func @transform_1(%arg0: i32, %arg1: i32) -> (i32, i32) {
    %c0_i32 = arith.constant 0 : i32
    return %arg1, %arg0 : i32, i32
  }
}

</mosaic_0001>

<llo_original>
// kernel: tpu_custom_call.1
$region0: #{tpu_custom_call.1}
  #allocation0 [shape = 'u32[]', space=smem, size = 0x4, offset = 0x4, fixed_abs, tag = 'smem constant byte address 0x4 - core index']
  #allocation1 [shape = 'u32[144,128]{1,0:T(1,128)}', space=vmem, size = 0x12000, scoped, tag = 'internal scratch']
  %s0 = inlined_call_operand.hbm [shape: f32[1,1024], index: 0, kind: input, shape index: {}]
  %s1 = inlined_call_operand.hbm [shape: f32[2,1024], index: 1, kind: output, shape index: {}]
  %s2 = sld [smem:[#allocation0]]
  $region18: #{tpu_custom_call.1} parent=0
    _
  %s4 = ssub.s32 1, %s2
  %s5 = scalar_select 0, %s4, %s2
  $region1: #{tpu_custom_call.1} parent=0
    #allocation2 [shape = 'u8[4096]{0}', space=vmem, size = 0x1000, scoped, tag = 'input window, operand 0, single buffered']
    #allocation3 [shape = 's32[1]{0}', space=sflag, size = 0x4, scoped, tag = 'scoped memory for tpu_custom_call.1']
    #allocation4 [shape = 's32[1]{0}', space=sflag, size = 0x4, scoped, tag = 'scoped memory for tpu_custom_call.1']
    #allocation5 [shape = 'u8[8192]{0}', space=vmem, size = 0x2000, scoped, tag = 'output window, operand 0, single buffered']
    %6 = vsyncpa [#allocation3], 0
    %7 = vsyncpa [#allocation4], 0
    // Predicated region
    $region2: #{tpu_custom_call.1} parent=1 // pred_check
      _
    $region3: #{tpu_custom_call.1} parent=1 // pred_check_branch
      %9 = sbr.rel (0) target = $region5
    $region4: #{tpu_custom_call.1} parent=1 // pred_region
      %s11 = ssub.s32 128, 128
      %12 = vsyncadd [#allocation3], %s11
      %s14 = sshll.u32 [#allocation2], 4
      %s15 = int_to_ptr.vmem [resolvable:$true] %s14
      %17 = dma.hbm_to_vmem [thread:$0]  %s0, 128, %s15, [#allocation3]
    $region5: #{tpu_custom_call.1} parent=1 // pred_fallthru
      _
    // Predicated region
    $region6: #{tpu_custom_call.1} parent=1 // pred_check
      _
    $region7: #{tpu_custom_call.1} parent=1 // pred_check_branch
      %19 = sbr.rel (0) target = $region9
    $region8: #{tpu_custom_call.1} parent=1 // pred_region
      %20 = dma.done [#allocation3], 128
    $region9: #{tpu_custom_call.1} parent=1 // pred_fallthru
      _
    %v21 = vld [vmem:[#allocation2] sm:$0xff]
    %v23 = vlaneseq
    %v24 = vshrl.u32 %v23, 7
    %v25 = vsub.s32 0, %v24
    %v26 = vrot.slane %v21, %v25
    %v27 = vlaneseq
    %v28 = vshrl.u32 %v27, 7
    %v29 = vsub.s32 1, %v28
    %v30 = vrot.slane %v21, %v29
    %v31 = vlaneseq
    %v32 = vshrl.u32 %v31, 7
    %v33 = vsub.s32 2, %v32
    %v34 = vrot.slane %v21, %v33
    %v35 = vlaneseq
    %v36 = vshrl.u32 %v35, 7
    %v37 = vsub.s32 3, %v36
    %v38 = vrot.slane %v21, %v37
    %v39 = vlaneseq
    %v40 = vshrl.u32 %v39, 7
    %v41 = vsub.s32 4, %v40
    %v42 = vrot.slane %v21, %v41
    %v43 = vlaneseq
    %v44 = vshrl.u32 %v43, 7
    %v45 = vsub.s32 5, %v44
    %v46 = vrot.slane %v21, %v45
    %v47 = vlaneseq
    %v48 = vshrl.u32 %v47, 7
    %v49 = vsub.s32 6, %v48
    %v50 = vrot.slane %v21, %v49
    %v51 = vlaneseq
    %v52 = vshrl.u32 %v51, 7
    %v53 = vsub.s32 7, %v52
    %v54 = vrot.slane %v21, %v53
    %v55 = vcombine.low %v26, %v30
    %v56 = vcombine.low %v34, %v38
    %v58 = vunpack.c.l.s4 1983009808
    %v59 = vunpack.c.0.s8 %v58
    %v60 = vlaneseq
    %v61 = vshrl.u32 %v60, 7
    %v62 = vsub.s32 %v59, %v61
    %v63 = vrot.slane %v55, %v62
    %v65 = vunpack.c.l.s4 1983009808
    %v66 = vunpack.c.0.s8 %v65
    %v67 = vlaneseq
    %v68 = vshrl.u32 %v67, 7
    %v69 = vsub.s32 %v66, %v68
    %v70 = vrot.slane %v56, %v69
    %v71 = vcombine.low %v63, %v70
    %v72 = vcombine.low %v42, %v46
    %v73 = vcombine.low %v50, %v54
    %v75 = vunpack.c.l.s4 1983009808
    %v76 = vunpack.c.0.s8 %v75
    %v77 = vlaneseq
    %v78 = vshrl.u32 %v77, 7
    %v79 = vsub.s32 %v76, %v78
    %v80 = vrot.slane %v72, %v79
    %v82 = vunpack.c.l.s4 1983009808
    %v83 = vunpack.c.0.s8 %v82
    %v84 = vlaneseq
    %v85 = vshrl.u32 %v84, 7
    %v86 = vsub.s32 %v83, %v85
    %v87 = vrot.slane %v73, %v86
    %v88 = vcombine.low %v80, %v87
    %91 = vst [vmem:[#allocation5] sm:$0xff] %v71
    %92 = vst [vmem:[#allocation5 + $0x8] sm:$0xff] %v88
    // Predicated region
    $region10: #{tpu_custom_call.1} parent=1 // pred_check
      _
    $region11: #{tpu_custom_call.1} parent=1 // pred_check_branch
      %94 = sbr.rel (0) target = $region13
    $region12: #{tpu_custom_call.1} parent=1 // pred_region
      %s96 = ssub.s32 256, 256
      %97 = vsyncadd [#allocation4], %s96
      %s99 = sshll.u32 [#allocation5], 4
      %s100 = int_to_ptr.vmem [resolvable:$true] %s99
      %102 = dma.vmem_to_hbm [thread:$0]  %s100, 256, %s1, [#allocation4]
    $region13: #{tpu_custom_call.1} parent=1 // pred_fallthru
      _
    // Predicated region
    $region14: #{tpu_custom_call.1} parent=1 // pred_check
      _
    $region15: #{tpu_custom_call.1} parent=1 // pred_check_branch
      %104 = sbr.rel (0) target = $region17
    $region16: #{tpu_custom_call.1} parent=1 // pred_region
      %105 = dma.done [#allocation4], 256
    $region17: #{tpu_custom_call.1} parent=1 // pred_fallthru
      _
    %106 = vsyncpa [#allocation3], 1
    %107 = vsyncpa [#allocation4], 1

</llo_original>
